<compile_context>
chip_gen: v7x
topology: tpu7x:2x2x1
jax: 0.10.0
libtpu: 0.0.40
codegen_flags: <defaults>
</compile_context>

<pallas_src>
import jax
import jax.numpy as jnp
import numpy as np
from jax import lax
from jax.experimental import pallas as pl
from jax.experimental.pallas import tpu as pltpu


def _round_up(n, m):
    return ((n + m - 1) // m) * m


def _l2_normalize(y):
    # F.normalize(y, p=2, dim=1): y / clamp_min(||y||_2, 1e-12)
    s = jnp.sum(y * y, axis=1, keepdims=True)
    return y * lax.rsqrt(jnp.maximum(s, 1e-24))


def multiclr_kernel(
    x_ref,
    w1_ref, w2_ref, w3_ref, w4_ref, w5_ref,   # bf16 weights (BN scale pre-folded)
    sh_h_ref,                                  # (8, hid_p)  f32: rows 0,1,2 = shifts of layers 1,2,4
    sh_o_ref,                                  # (8, out_p)  f32: rows 0,1   = shift layer 3, bias layer 5
    proj_out_ref, pred_out_ref,
):
    xb = x_ref[...].astype(jnp.bfloat16)

    def layer(h_bf16, w_ref, shift, relu):
        y = jnp.dot(h_bf16, w_ref[...], preferred_element_type=jnp.float32)
        y = y + shift
        if relu:
            y = jnp.maximum(y, 0.0)
        return y

    # Projector: Linear->BN->ReLU -> Linear->BN->ReLU -> Linear->BN
    h1 = layer(xb, w1_ref, sh_h_ref[0:1, :], True).astype(jnp.bfloat16)
    h2 = layer(h1, w2_ref, sh_h_ref[1:2, :], True).astype(jnp.bfloat16)
    proj = layer(h2, w3_ref, sh_o_ref[0:1, :], False)                      # f32

    # Predictor: Linear->BN->ReLU -> (Dropout = id in eval) -> Linear
    p = layer(proj.astype(jnp.bfloat16), w4_ref, sh_h_ref[2:3, :], True).astype(jnp.bfloat16)
    pred = layer(p, w5_ref, sh_o_ref[1:2, :], False)                       # f32

    proj_out_ref[...] = _l2_normalize(proj).astype(proj_out_ref.dtype)
    pred_out_ref[...] = _l2_normalize(pred).astype(pred_out_ref.dtype)


def prepare_kernel_params(params, lane=128):
    """Fold BN scale into weight columns, cast weights to bf16, pad feature dims
    to lane multiples, and pack the per-layer shifts into two operands."""
    in_dim, hidden_dim = params["w1"].shape
    out_dim = params["w3"].shape[1]
    in_p = _round_up(in_dim, lane)
    hid_p = _round_up(hidden_dim, lane)
    out_p = _round_up(out_dim, lane)

    def fold_pad(w, scale, din_p, dout_p):
        wf = w * scale[None, :]                                   # W' = W * bn_scale (per out column)
        wf = jnp.pad(wf, ((0, din_p - w.shape[0]), (0, dout_p - w.shape[1])))
        return wf.astype(jnp.bfloat16)

    kp = {
        "w1": fold_pad(params["w1"], params["a1"][0], in_p, hid_p),
        "w2": fold_pad(params["w2"], params["a2"][0], hid_p, hid_p),
        "w3": fold_pad(params["w3"], params["a3"][0], hid_p, out_p),
        "w4": fold_pad(params["w4"], params["a4"][0], out_p, hid_p),
        "w5": fold_pad(params["w5"], jnp.ones((out_dim,), jnp.float32), hid_p, out_p),
    }
    sh_h = jnp.zeros((8, hid_p), jnp.float32)
    sh_h = sh_h.at[0, :hidden_dim].set(params["a1"][1])
    sh_h = sh_h.at[1, :hidden_dim].set(params["a2"][1])
    sh_h = sh_h.at[2, :hidden_dim].set(params["a4"][1])
    sh_o = jnp.zeros((8, out_p), jnp.float32)
    sh_o = sh_o.at[0, :out_dim].set(params["a3"][1])
    sh_o = sh_o.at[1, :out_dim].set(params["b5"][0])
    kp["sh_h"], kp["sh_o"] = sh_h, sh_o
    kp["dims"] = (in_dim, hidden_dim, out_dim, in_p, hid_p, out_p)
    return kp


def multi_clr_head(x, kparams, tb=256):
    """x: [B, in_dim] float32. kparams: output of prepare_kernel_params."""
    B = x.shape[0]
    in_dim, hidden_dim, out_dim, in_p, hid_p, out_p = kparams["dims"]

    TB = min(tb, _round_up(B, 8))
    B_pad = _round_up(B, TB)
    x_p = jnp.pad(x.astype(jnp.float32),
                  ((0, B_pad - B), (0, in_p - x.shape[1])))

    vmem = pltpu.MemorySpace.VMEM
    batch_spec = lambda d: pl.BlockSpec((TB, d), lambda i: (i, 0), memory_space=vmem)
    const_spec = lambda r, c: pl.BlockSpec((r, c), lambda i: (0, 0), memory_space=vmem)

    grid_spec = pltpu.PrefetchScalarGridSpec(
        num_scalar_prefetch=0,
        grid=(B_pad // TB,),
        in_specs=[
            batch_spec(in_p),                 # x tile
            const_spec(in_p, hid_p),          # w1
            const_spec(hid_p, hid_p),         # w2
            const_spec(hid_p, out_p),         # w3
            const_spec(out_p, hid_p),         # w4
            const_spec(hid_p, out_p),         # w5
            const_spec(8, hid_p),             # packed hidden-dim shifts
            const_spec(8, out_p),             # packed out-dim shifts
        ],
        out_specs=(
            batch_spec(out_p),                # proj
            batch_spec(out_p),                # pred
        ),
    )

    out_shape = (
        jax.ShapeDtypeStruct((B_pad, out_p), jnp.float32),
        jax.ShapeDtypeStruct((B_pad, out_p), jnp.float32),
    )

    proj_p, pred_p = pl.pallas_call(
        multiclr_kernel,
        out_shape=out_shape,
        grid_spec=grid_spec,
        compiler_params=pltpu.CompilerParams(
            dimension_semantics=("parallel",),        # megacore-shard batch tiles on v7x
            vmem_limit_bytes=64 * 1024 * 1024,
        ),
    )(
        x_p,
        kparams["w1"], kparams["w2"], kparams["w3"], kparams["w4"], kparams["w5"],
        kparams["sh_h"], kparams["sh_o"],
    )
    return proj_p[:B, :out_dim], pred_p[:B, :out_dim]


def make_params(key, in_dim, hidden_dim, out_dim, bn_eps=1e-5):
    """Deterministic synthetic parameters; BN (eval, running_mean=0, running_var=1)
    folded with the Linear bias into a (2, dim) [scale; shift] affine."""
    keys = jax.random.split(key, 20)
    k = iter(keys)

    def linear(kw, kb, din, dout):
        w = 0.05 * jax.random.normal(kw, (din, dout), jnp.float32)   # stored as [in, out]
        b = 0.05 * jax.random.normal(kb, (dout,), jnp.float32)
        return w, b

    def bn(kg, kb, dim):
        gamma = 1.0 + 0.1 * jax.random.normal(kg, (dim,), jnp.float32)
        beta = 0.1 * jax.random.normal(kb, (dim,), jnp.float32)
        running_mean = jnp.zeros((dim,), jnp.float32)
        running_var = jnp.ones((dim,), jnp.float32)
        scale = gamma / jnp.sqrt(running_var + bn_eps)
        shift = beta - running_mean * scale
        return scale, shift

    def fold(lin_b, bn_scale, bn_shift, dim):
        # (h @ W + b) * s + t  ==  (h @ (W*s)) + (b*s + t)
        scale = bn_scale
        shift = lin_b * bn_scale + bn_shift
        return jnp.stack([scale, shift], axis=0).reshape(2, dim)

    params = {}
    w1, b1 = linear(next(k), next(k), in_dim, hidden_dim)
    s1, t1 = bn(next(k), next(k), hidden_dim)
    params["w1"], params["a1"] = w1, fold(b1, s1, t1, hidden_dim)
    w2, b2 = linear(next(k), next(k), hidden_dim, hidden_dim)
    s2, t2 = bn(next(k), next(k), hidden_dim)
    params["w2"], params["a2"] = w2, fold(b2, s2, t2, hidden_dim)
    w3, b3 = linear(next(k), next(k), hidden_dim, out_dim)
    s3, t3 = bn(next(k), next(k), out_dim)
    params["w3"], params["a3"] = w3, fold(b3, s3, t3, out_dim)
    w4, b4 = linear(next(k), next(k), out_dim, hidden_dim)
    s4, t4 = bn(next(k), next(k), hidden_dim)
    params["w4"], params["a4"] = w4, fold(b4, s4, t4, hidden_dim)
    w5, b5 = linear(next(k), next(k), hidden_dim, out_dim)
    params["w5"], params["b5"] = w5, b5.reshape(1, out_dim)
    return params


def reference_forward(x, params):
    def fused(h, w, a, relu):
        y = h @ w
        y = y * a[0:1, :] + a[1:2, :]
        return jnp.maximum(y, 0.0) if relu else y

    h = fused(x, params["w1"], params["a1"], True)
    h = fused(h, params["w2"], params["a2"], True)
    proj = fused(h, params["w3"], params["a3"], False)
    p = fused(proj, params["w4"], params["a4"], True)
    pred = p @ params["w5"] + params["b5"]

    def norm(y):
        n = jnp.maximum(jnp.linalg.norm(y, axis=1, keepdims=True), 1e-12)
        return y / n

    return norm(proj), norm(pred)


if __name__ == "__main__":
    B, IN_DIM, HIDDEN_DIM, OUT_DIM = 8, 32, 32, 16

    key = jax.random.PRNGKey(0)
    kx, kp = jax.random.split(key)
    x = jax.random.normal(kx, (B, IN_DIM), jnp.float32)
    params = make_params(kp, IN_DIM, HIDDEN_DIM, OUT_DIM)
    kparams = prepare_kernel_params(params)

    proj, pred = multi_clr_head(x, kparams)
    proj = jax.block_until_ready(proj)
    pred = jax.block_until_ready(pred)

    proj_ref, pred_ref = reference_forward(x, params)
    # bf16 matmuls -> looser tolerance than the pure-f32 version.
    np.testing.assert_allclose(np.asarray(proj), np.asarray(proj_ref), rtol=5e-2, atol=2e-2)
    np.testing.assert_allclose(np.asarray(pred), np.asarray(pred_ref), rtol=5e-2, atol=2e-2)

    print("KERNEL_OK")
</pallas_src>

<mosaic_0001>
module attributes {stable_mosaic.version = 11 : i64} {
  func.func @multiclr_kernel(%arg0: i32, %arg1: memref<8x128xf32, #tpu.memory_space<vmem>>, %arg2: memref<128x128xbf16, #tpu.memory_space<vmem>>, %arg3: memref<128x128xbf16, #tpu.memory_space<vmem>>, %arg4: memref<128x128xbf16, #tpu.memory_space<vmem>>, %arg5: memref<128x128xbf16, #tpu.memory_space<vmem>>, %arg6: memref<128x128xbf16, #tpu.memory_space<vmem>>, %arg7: memref<8x128xf32, #tpu.memory_space<vmem>>, %arg8: memref<8x128xf32, #tpu.memory_space<vmem>>, %arg9: memref<8x128xf32, #tpu.memory_space<vmem>>, %arg10: memref<8x128xf32, #tpu.memory_space<vmem>>) attributes {dimension_semantics = [#tpu.dimension_semantics<parallel>], iteration_bounds = array<i64: 1>, scalar_prefetch = 0 : i64, scratch_operands = 0 : i64, tpu.core_type = #tpu.core_type<tc>, window_params = [{transform_indices = @transform_0, window_bounds = array<i64: 8, 128>}, {pipeline_mode = #tpu.pipeline_mode<synchronous>, transform_indices = @transform_1, window_bounds = array<i64: 128, 128>}, {pipeline_mode = #tpu.pipeline_mode<synchronous>, transform_indices = @transform_2, window_bounds = array<i64: 128, 128>}, {pipeline_mode = #tpu.pipeline_mode<synchronous>, transform_indices = @transform_3, window_bounds = array<i64: 128, 128>}, {pipeline_mode = #tpu.pipeline_mode<synchronous>, transform_indices = @transform_4, window_bounds = array<i64: 128, 128>}, {pipeline_mode = #tpu.pipeline_mode<synchronous>, transform_indices = @transform_5, window_bounds = array<i64: 128, 128>}, {pipeline_mode = #tpu.pipeline_mode<synchronous>, transform_indices = @transform_6, window_bounds = array<i64: 8, 128>}, {pipeline_mode = #tpu.pipeline_mode<synchronous>, transform_indices = @transform_7, window_bounds = array<i64: 8, 128>}, {transform_indices = @transform_8, window_bounds = array<i64: 8, 128>}, {transform_indices = @transform_9, window_bounds = array<i64: 8, 128>}]} {
    %c0 = arith.constant 0 : index
    %c0_0 = arith.constant 0 : index
    %0 = vector.load %arg1[%c0, %c0_0] : memref<8x128xf32, #tpu.memory_space<vmem>>, vector<8x128xf32>
    %1 = arith.truncf %0 : vector<8x128xf32> to vector<8x128xbf16>
    %c0_1 = arith.constant 0 : index
    %c0_2 = arith.constant 0 : index
    %2 = vector.load %arg7[%c0_1, %c0_2] : memref<8x128xf32, #tpu.memory_space<vmem>>, vector<1x128xf32>
    %c0_3 = arith.constant 0 : index
    %c0_4 = arith.constant 0 : index
    %3 = vector.load %arg2[%c0_3, %c0_4] : memref<128x128xbf16, #tpu.memory_space<vmem>>, vector<128x128xbf16>
    %cst = arith.constant dense<0.000000e+00> : vector<8x128xf32>
    %4 = tpu.matmul %1, %3, %cst {dimension_numbers = #tpu.dot_dimension_numbers<[1], [0], [0], [1], [0, 0, 1, 1], [], []>} : vector<8x128xbf16>, vector<128x128xbf16>, vector<8x128xf32> -> vector<8x128xf32>
    %5 = vector.broadcast %2 : vector<1x128xf32> to vector<8x128xf32>
    %6 = arith.addf %4, %5 : vector<8x128xf32>
    %cst_5 = arith.constant 0.000000e+00 : f32
    %7 = vector.broadcast %cst_5 : f32 to vector<8x128xf32>
    %8 = arith.maximumf %6, %7 : vector<8x128xf32>
    %9 = arith.truncf %8 : vector<8x128xf32> to vector<8x128xbf16>
    %c1 = arith.constant 1 : index
    %c0_6 = arith.constant 0 : index
    %10 = vector.load %arg7[%c1, %c0_6] : memref<8x128xf32, #tpu.memory_space<vmem>>, vector<1x128xf32>
    %c0_7 = arith.constant 0 : index
    %c0_8 = arith.constant 0 : index
    %11 = vector.load %arg3[%c0_7, %c0_8] : memref<128x128xbf16, #tpu.memory_space<vmem>>, vector<128x128xbf16>
    %cst_9 = arith.constant dense<0.000000e+00> : vector<8x128xf32>
    %12 = tpu.matmul %9, %11, %cst_9 {dimension_numbers = #tpu.dot_dimension_numbers<[1], [0], [0], [1], [0, 0, 1, 1], [], []>} : vector<8x128xbf16>, vector<128x128xbf16>, vector<8x128xf32> -> vector<8x128xf32>
    %13 = vector.broadcast %10 : vector<1x128xf32> to vector<8x128xf32>
    %14 = arith.addf %12, %13 : vector<8x128xf32>
    %cst_10 = arith.constant 0.000000e+00 : f32
    %15 = vector.broadcast %cst_10 : f32 to vector<8x128xf32>
    %16 = arith.maximumf %14, %15 : vector<8x128xf32>
    %17 = arith.truncf %16 : vector<8x128xf32> to vector<8x128xbf16>
    %c0_11 = arith.constant 0 : index
    %c0_12 = arith.constant 0 : index
    %18 = vector.load %arg8[%c0_11, %c0_12] : memref<8x128xf32, #tpu.memory_space<vmem>>, vector<1x128xf32>
    %c0_13 = arith.constant 0 : index
    %c0_14 = arith.constant 0 : index
    %19 = vector.load %arg4[%c0_13, %c0_14] : memref<128x128xbf16, #tpu.memory_space<vmem>>, vector<128x128xbf16>
    %cst_15 = arith.constant dense<0.000000e+00> : vector<8x128xf32>
    %20 = tpu.matmul %17, %19, %cst_15 {dimension_numbers = #tpu.dot_dimension_numbers<[1], [0], [0], [1], [0, 0, 1, 1], [], []>} : vector<8x128xbf16>, vector<128x128xbf16>, vector<8x128xf32> -> vector<8x128xf32>
    %21 = vector.broadcast %18 : vector<1x128xf32> to vector<8x128xf32>
    %22 = arith.addf %20, %21 : vector<8x128xf32>
    %23 = arith.truncf %22 : vector<8x128xf32> to vector<8x128xbf16>
    %c2 = arith.constant 2 : index
    %c0_16 = arith.constant 0 : index
    %24 = vector.load %arg7[%c2, %c0_16] : memref<8x128xf32, #tpu.memory_space<vmem>>, vector<1x128xf32>
    %c0_17 = arith.constant 0 : index
    %c0_18 = arith.constant 0 : index
    %25 = vector.load %arg5[%c0_17, %c0_18] : memref<128x128xbf16, #tpu.memory_space<vmem>>, vector<128x128xbf16>
    %cst_19 = arith.constant dense<0.000000e+00> : vector<8x128xf32>
    %26 = tpu.matmul %23, %25, %cst_19 {dimension_numbers = #tpu.dot_dimension_numbers<[1], [0], [0], [1], [0, 0, 1, 1], [], []>} : vector<8x128xbf16>, vector<128x128xbf16>, vector<8x128xf32> -> vector<8x128xf32>
    %27 = vector.broadcast %24 : vector<1x128xf32> to vector<8x128xf32>
    %28 = arith.addf %26, %27 : vector<8x128xf32>
    %cst_20 = arith.constant 0.000000e+00 : f32
    %29 = vector.broadcast %cst_20 : f32 to vector<8x128xf32>
    %30 = arith.maximumf %28, %29 : vector<8x128xf32>
    %31 = arith.truncf %30 : vector<8x128xf32> to vector<8x128xbf16>
    %c1_21 = arith.constant 1 : index
    %c0_22 = arith.constant 0 : index
    %32 = vector.load %arg8[%c1_21, %c0_22] : memref<8x128xf32, #tpu.memory_space<vmem>>, vector<1x128xf32>
    %c0_23 = arith.constant 0 : index
    %c0_24 = arith.constant 0 : index
    %33 = vector.load %arg6[%c0_23, %c0_24] : memref<128x128xbf16, #tpu.memory_space<vmem>>, vector<128x128xbf16>
    %cst_25 = arith.constant dense<0.000000e+00> : vector<8x128xf32>
    %34 = tpu.matmul %31, %33, %cst_25 {dimension_numbers = #tpu.dot_dimension_numbers<[1], [0], [0], [1], [0, 0, 1, 1], [], []>} : vector<8x128xbf16>, vector<128x128xbf16>, vector<8x128xf32> -> vector<8x128xf32>
    %35 = vector.broadcast %32 : vector<1x128xf32> to vector<8x128xf32>
    %36 = arith.addf %34, %35 : vector<8x128xf32>
    %37 = arith.mulf %22, %22 : vector<8x128xf32>
    %cst_26 = arith.constant dense<0.000000e+00> : vector<8xf32>
    %38 = vector.multi_reduction <add>, %37, %cst_26 [1] : vector<8x128xf32> to vector<8xf32>
    %39 = vector.shape_cast %38 : vector<8xf32> to vector<8x1xf32>
    %cst_27 = arith.constant 1.000000e-24 : f32
    %40 = vector.broadcast %cst_27 : f32 to vector<8x1xf32>
    %41 = arith.maximumf %39, %40 : vector<8x1xf32>
    %42 = math.rsqrt %41 : vector<8x1xf32>
    %43 = vector.broadcast %42 : vector<8x1xf32> to vector<8x128xf32>
    %44 = arith.mulf %22, %43 : vector<8x128xf32>
    %c0_28 = arith.constant 0 : index
    %c0_29 = arith.constant 0 : index
    %45 = vector.load %arg9[%c0_28, %c0_29] : memref<8x128xf32, #tpu.memory_space<vmem>>, vector<8x128xf32>
    tpu.vector_store %arg9[%c0_28, %c0_29], %44 {strides = array<i32>} : memref<8x128xf32, #tpu.memory_space<vmem>>, vector<8x128xf32>,
    %46 = arith.mulf %36, %36 : vector<8x128xf32>
    %cst_30 = arith.constant dense<0.000000e+00> : vector<8xf32>
    %47 = vector.multi_reduction <add>, %46, %cst_30 [1] : vector<8x128xf32> to vector<8xf32>
    %48 = vector.shape_cast %47 : vector<8xf32> to vector<8x1xf32>
    %cst_31 = arith.constant 1.000000e-24 : f32
    %49 = vector.broadcast %cst_31 : f32 to vector<8x1xf32>
    %50 = arith.maximumf %48, %49 : vector<8x1xf32>
    %51 = math.rsqrt %50 : vector<8x1xf32>
    %52 = vector.broadcast %51 : vector<8x1xf32> to vector<8x128xf32>
    %53 = arith.mulf %36, %52 : vector<8x128xf32>
    %c0_32 = arith.constant 0 : index
    %c0_33 = arith.constant 0 : index
    %54 = vector.load %arg10[%c0_32, %c0_33] : memref<8x128xf32, #tpu.memory_space<vmem>>, vector<8x128xf32>
    tpu.vector_store %arg10[%c0_32, %c0_33], %53 {strides = array<i32>} : memref<8x128xf32, #tpu.memory_space<vmem>>, vector<8x128xf32>,
    return
  }
  func.func @transform_0(%arg0: i32) -> (i32, i32) {
    %c0_i32 = arith.constant 0 : i32
    %c0_i32_0 = arith.constant 0 : i32
    return %arg0, %c0_i32 : i32, i32
  }
  func.func @transform_1(%arg0: i32) -> (i32, i32) {
    %c0_i32 = arith.constant 0 : i32
    %c0_i32_0 = arith.constant 0 : i32
    %c0_i32_1 = arith.constant 0 : i32
    return %c0_i32, %c0_i32_0 : i32, i32
  }
  func.func @transform_2(%arg0: i32) -> (i32, i32) {
    %c0_i32 = arith.constant 0 : i32
    %c0_i32_0 = arith.constant 0 : i32
    %c0_i32_1 = arith.constant 0 : i32
    return %c0_i32, %c0_i32_0 : i32, i32
  }
  func.func @transform_3(%arg0: i32) -> (i32, i32) {
    %c0_i32 = arith.constant 0 : i32
    %c0_i32_0 = arith.constant 0 : i32
    %c0_i32_1 = arith.constant 0 : i32
    return %c0_i32, %c0_i32_0 : i32, i32
  }
  func.func @transform_4(%arg0: i32) -> (i32, i32) {
    %c0_i32 = arith.constant 0 : i32
    %c0_i32_0 = arith.constant 0 : i32
    %c0_i32_1 = arith.constant 0 : i32
    return %c0_i32, %c0_i32_0 : i32, i32
  }
  func.func @transform_5(%arg0: i32) -> (i32, i32) {
    %c0_i32 = arith.constant 0 : i32
    %c0_i32_0 = arith.constant 0 : i32
    %c0_i32_1 = arith.constant 0 : i32
    return %c0_i32, %c0_i32_0 : i32, i32
  }
  func.func @transform_6(%arg0: i32) -> (i32, i32) {
    %c0_i32 = arith.constant 0 : i32
    %c0_i32_0 = arith.constant 0 : i32
    %c0_i32_1 = arith.constant 0 : i32
    return %c0_i32, %c0_i32_0 : i32, i32
  }
  func.func @transform_7(%arg0: i32) -> (i32, i32) {
    %c0_i32 = arith.constant 0 : i32
    %c0_i32_0 = arith.constant 0 : i32
    %c0_i32_1 = arith.constant 0 : i32
    return %c0_i32, %c0_i32_0 : i32, i32
  }
  func.func @transform_8(%arg0: i32) -> (i32, i32) {
    %c0_i32 = arith.constant 0 : i32
    %c0_i32_0 = arith.constant 0 : i32
    return %arg0, %c0_i32 : i32, i32
  }
  func.func @transform_9(%arg0: i32) -> (i32, i32) {
    %c0_i32 = arith.constant 0 : i32
    %c0_i32_0 = arith.constant 0 : i32
    return %arg0, %c0_i32 : i32, i32
  }
}

</mosaic_0001>

<llo_original>
// kernel: tpu_custom_call.1
$region0: #{tpu_custom_call.1}
  #allocation0 [shape = 'u32[]', space=smem, size = 0x4, offset = 0x4, fixed_abs, tag = 'smem constant byte address 0x4 - core index']
  #allocation1 [shape = 'u32[144,128]{1,0:T(1,128)}', space=vmem, size = 0x12000, scoped, tag = 'internal scratch']
  %s0 = inlined_call_operand.hbm [shape: f32[8,128], index: 0, kind: input, shape index: {}]
  %s1 = inlined_call_operand.hbm [shape: bf16[128,128], index: 1, kind: input, shape index: {}]
  %s2 = inlined_call_operand.hbm [shape: bf16[128,128], index: 2, kind: input, shape index: {}]
  %s3 = inlined_call_operand.hbm [shape: bf16[128,128], index: 3, kind: input, shape index: {}]
  %s4 = inlined_call_operand.hbm [shape: bf16[128,128], index: 4, kind: input, shape index: {}]
  %s5 = inlined_call_operand.hbm [shape: bf16[128,128], index: 5, kind: input, shape index: {}]
  %s6 = inlined_call_operand.hbm [shape: f32[8,128], index: 6, kind: input, shape index: {}]
  %s7 = inlined_call_operand.hbm [shape: f32[8,128], index: 7, kind: input, shape index: {}]
  %s8 = inlined_call_operand.hbm [shape: f32[8,128], index: 8, kind: output, shape index: {0}]
  %s9 = inlined_call_operand.hbm [shape: f32[8,128], index: 9, kind: output, shape index: {1}]
  %10 = xla_tuple %s8, %s9
  %s11 = sld [smem:[#allocation0]]
  $region82: #{tpu_custom_call.1} parent=0
    _
  %s13 = ssub.s32 1, %s11
  %s14 = scalar_select 0, %s13, %s11
  $region1: #{tpu_custom_call.1} parent=0
    #allocation2 [shape = 'u8[4096]{0}', space=vmem, size = 0x1000, scoped, tag = 'input window, operand 0, single buffered']
    #allocation3 [shape = 's32[1]{0}', space=sflag, size = 0x4, scoped, tag = 'scoped memory for tpu_custom_call.1']
    #allocation4 [shape = 's32[1]{0}', space=sflag, size = 0x4, scoped, tag = 'scoped memory for tpu_custom_call.1']
    #allocation5 [shape = 'u8[32768]{0}', space=vmem, size = 0x8000, scoped, tag = 'input window, operand 1, single buffered']
    #allocation6 [shape = 's32[1]{0}', space=sflag, size = 0x4, scoped, tag = 'scoped memory for tpu_custom_call.1']
    #allocation7 [shape = 'u8[32768]{0}', space=vmem, size = 0x8000, scoped, tag = 'input window, operand 2, single buffered']
    #allocation8 [shape = 'u8[32768]{0}', space=vmem, size = 0x8000, scoped, tag = 'input window, operand 3, single buffered']
    #allocation9 [shape = 's32[1]{0}', space=sflag, size = 0x4, scoped, tag = 'scoped memory for tpu_custom_call.1']
    #allocation10 [shape = 'u8[32768]{0}', space=vmem, size = 0x8000, scoped, tag = 'input window, operand 4, single buffered']
    #allocation11 [shape = 'u8[32768]{0}', space=vmem, size = 0x8000, scoped, tag = 'input window, operand 5, single buffered']
    #allocation12 [shape = 's32[1]{0}', space=sflag, size = 0x4, scoped, tag = 'scoped memory for tpu_custom_call.1']
    #allocation13 [shape = 'u8[4096]{0}', space=vmem, size = 0x1000, scoped, tag = 'input window, operand 6, single buffered']
    #allocation14 [shape = 'u8[4096]{0}', space=vmem, size = 0x1000, scoped, tag = 'input window, operand 7, single buffered']
    #allocation15 [shape = 's32[1]{0}', space=sflag, size = 0x4, scoped, tag = 'scoped memory for tpu_custom_call.1']
    #allocation16 [shape = 'u8[4096]{0}', space=vmem, size = 0x1000, scoped, tag = 'output window, operand 0, single buffered']
    #allocation17 [shape = 'u8[4096]{0}', space=vmem, size = 0x1000, scoped, tag = 'output window, operand 1, single buffered']
    #allocation18 [shape = 's32[1]{0}', space=sflag, size = 0x4, scoped, tag = 'scoped memory for tpu_custom_call.1']
    %15 = vsyncpa [#allocation3], 0
    %16 = vsyncpa [#allocation6], 0
    %17 = vsyncpa [#allocation9], 0
    %18 = vsyncpa [#allocation12], 0
    %19 = vsyncpa [#allocation15], 0
    %20 = vsyncpa [#allocation4], 0
    %21 = vsyncpa [#allocation18], 0
    // Predicated region
    $region2: #{tpu_custom_call.1} parent=1 // pred_check
      _
    $region3: #{tpu_custom_call.1} parent=1 // pred_check_branch
      %23 = sbr.rel (0) target = $region5
    $region4: #{tpu_custom_call.1} parent=1 // pred_region
      %s25 = ssub.s32 128, 128
      %26 = vsyncadd [#allocation3], %s25
      %s28 = sshll.u32 [#allocation2], 4
      %s29 = int_to_ptr.vmem [resolvable:$true] %s28
      %31 = dma.hbm_to_vmem [thread:$0]  %s0, 128, %s29, [#allocation3]
    $region5: #{tpu_custom_call.1} parent=1 // pred_fallthru
      _
    // Predicated region
    $region6: #{tpu_custom_call.1} parent=1 // pred_check
      _
    $region7: #{tpu_custom_call.1} parent=1 // pred_check_branch
      %33 = sbr.rel (0) target = $region9
    $region8: #{tpu_custom_call.1} parent=1 // pred_region
      %s35 = ssub.s32 1024, 1024
      %36 = vsyncadd [#allocation6], %s35
      %s37 = sshll.u32 [#allocation5], 4
      %s38 = int_to_ptr.vmem [resolvable:$true] %s37
      %43 = dma.hbm_to_vmem [thread:$0]  %s1, 1024, %s38, [#allocation6], 64, 64, 4
    $region9: #{tpu_custom_call.1} parent=1 // pred_fallthru
      _
    // Predicated region
    $region10: #{tpu_custom_call.1} parent=1 // pred_check
      _
    $region11: #{tpu_custom_call.1} parent=1 // pred_check_branch
      %45 = sbr.rel (0) target = $region13
    $region12: #{tpu_custom_call.1} parent=1 // pred_region
      %s47 = ssub.s32 1024, 1024
      %48 = vsyncadd [#allocation6], %s47
      %s49 = sshll.u32 [#allocation7], 4
      %s50 = int_to_ptr.vmem [resolvable:$true] %s49
      %55 = dma.hbm_to_vmem [thread:$0]  %s2, 1024, %s50, [#allocation6], 64, 64, 4
    $region13: #{tpu_custom_call.1} parent=1 // pred_fallthru
      _
    // Predicated region
    $region14: #{tpu_custom_call.1} parent=1 // pred_check
      _
    $region15: #{tpu_custom_call.1} parent=1 // pred_check_branch
      %57 = sbr.rel (0) target = $region17
    $region16: #{tpu_custom_call.1} parent=1 // pred_region
      %s59 = ssub.s32 1024, 1024
      %60 = vsyncadd [#allocation9], %s59
      %s61 = sshll.u32 [#allocation8], 4
      %s62 = int_to_ptr.vmem [resolvable:$true] %s61
      %67 = dma.hbm_to_vmem [thread:$0]  %s3, 1024, %s62, [#allocation9], 64, 64, 4
    $region17: #{tpu_custom_call.1} parent=1 // pred_fallthru
      _
    // Predicated region
    $region18: #{tpu_custom_call.1} parent=1 // pred_check
      _
    $region19: #{tpu_custom_call.1} parent=1 // pred_check_branch
      %69 = sbr.rel (0) target = $region21
    $region20: #{tpu_custom_call.1} parent=1 // pred_region
      %s71 = ssub.s32 1024, 1024
      %72 = vsyncadd [#allocation9], %s71
      %s73 = sshll.u32 [#allocation10], 4
      %s74 = int_to_ptr.vmem [resolvable:$true] %s73
      %79 = dma.hbm_to_vmem [thread:$0]  %s4, 1024, %s74, [#allocation9], 64, 64, 4
    $region21: #{tpu_custom_call.1} parent=1 // pred_fallthru
      _
    // Predicated region
    $region22: #{tpu_custom_call.1} parent=1 // pred_check
      _
    $region23: #{tpu_custom_call.1} parent=1 // pred_check_branch
      %81 = sbr.rel (0) target = $region25
    $region24: #{tpu_custom_call.1} parent=1 // pred_region
      %s83 = ssub.s32 1024, 1024
      %84 = vsyncadd [#allocation12], %s83
      %s85 = sshll.u32 [#allocation11], 4
      %s86 = int_to_ptr.vmem [resolvable:$true] %s85
      %91 = dma.hbm_to_vmem [thread:$0]  %s5, 1024, %s86, [#allocation12], 64, 64, 4
    $region25: #{tpu_custom_call.1} parent=1 // pred_fallthru
      _
    // Predicated region
    $region26: #{tpu_custom_call.1} parent=1 // pred_check
      _
    $region27: #{tpu_custom_call.1} parent=1 // pred_check_branch
      %93 = sbr.rel (0) target = $region29
    $region28: #{tpu_custom_call.1} parent=1 // pred_region
      %s95 = ssub.s32 128, 128
      %96 = vsyncadd [#allocation12], %s95
      %s98 = sshll.u32 [#allocation13], 4
      %s99 = int_to_ptr.vmem [resolvable:$true] %s98
      %101 = dma.hbm_to_vmem [thread:$0]  %s6, 128, %s99, [#allocation12]
    $region29: #{tpu_custom_call.1} parent=1 // pred_fallthru
      _
    // Predicated region
    $region30: #{tpu_custom_call.1} parent=1 // pred_check
      _
    $region31: #{tpu_custom_call.1} parent=1 // pred_check_branch
      %103 = sbr.rel (0) target = $region33
    $region32: #{tpu_custom_call.1} parent=1 // pred_region
      %s105 = ssub.s32 128, 128
      %106 = vsyncadd [#allocation15], %s105
      %s108 = sshll.u32 [#allocation14], 4
      %s109 = int_to_ptr.vmem [resolvable:$true] %s108
      %111 = dma.hbm_to_vmem [thread:$0]  %s7, 128, %s109, [#allocation15]
    $region33: #{tpu_custom_call.1} parent=1 // pred_fallthru
      _
    // Predicated region
    $region34: #{tpu_custom_call.1} parent=1 // pred_check
      _
    $region35: #{tpu_custom_call.1} parent=1 // pred_check_branch
      %113 = sbr.rel (0) target = $region37
    $region36: #{tpu_custom_call.1} parent=1 // pred_region
      %114 = dma.done [#allocation3], 128
    $region37: #{tpu_custom_call.1} parent=1 // pred_fallthru
      _
    // Predicated region
    $region38: #{tpu_custom_call.1} parent=1 // pred_check
      _
    $region39: #{tpu_custom_call.1} parent=1 // pred_check_branch
      %116 = sbr.rel (0) target = $region41
    $region40: #{tpu_custom_call.1} parent=1 // pred_region
      %117 = dma.done [#allocation6], 1024
    $region41: #{tpu_custom_call.1} parent=1 // pred_fallthru
      _
    // Predicated region
    $region42: #{tpu_custom_call.1} parent=1 // pred_check
      _
    $region43: #{tpu_custom_call.1} parent=1 // pred_check_branch
      %119 = sbr.rel (0) target = $region45
    $region44: #{tpu_custom_call.1} parent=1 // pred_region
      %120 = dma.done [#allocation6], 1024
    $region45: #{tpu_custom_call.1} parent=1 // pred_fallthru
      _
    // Predicated region
    $region46: #{tpu_custom_call.1} parent=1 // pred_check
      _
    $region47: #{tpu_custom_call.1} parent=1 // pred_check_branch
      %122 = sbr.rel (0) target = $region49
    $region48: #{tpu_custom_call.1} parent=1 // pred_region
      %123 = dma.done [#allocation9], 1024
    $region49: #{tpu_custom_call.1} parent=1 // pred_fallthru
      _
    // Predicated region
    $region50: #{tpu_custom_call.1} parent=1 // pred_check
      _
    $region51: #{tpu_custom_call.1} parent=1 // pred_check_branch
      %125 = sbr.rel (0) target = $region53
    $region52: #{tpu_custom_call.1} parent=1 // pred_region
      %126 = dma.done [#allocation9], 1024
    $region53: #{tpu_custom_call.1} parent=1 // pred_fallthru
      _
    // Predicated region
    $region54: #{tpu_custom_call.1} parent=1 // pred_check
      _
    $region55: #{tpu_custom_call.1} parent=1 // pred_check_branch
      %128 = sbr.rel (0) target = $region57
    $region56: #{tpu_custom_call.1} parent=1 // pred_region
      %129 = dma.done [#allocation12], 1024
    $region57: #{tpu_custom_call.1} parent=1 // pred_fallthru
      _
    // Predicated region
    $region58: #{tpu_custom_call.1} parent=1 // pred_check
      _
    $region59: #{tpu_custom_call.1} parent=1 // pred_check_branch
      %131 = sbr.rel (0) target = $region61
    $region60: #{tpu_custom_call.1} parent=1 // pred_region
      %132 = dma.done [#allocation12], 128
    $region61: #{tpu_custom_call.1} parent=1 // pred_fallthru
      _
    // Predicated region
    $region62: #{tpu_custom_call.1} parent=1 // pred_check
      _
    $region63: #{tpu_custom_call.1} parent=1 // pred_check_branch
      %134 = sbr.rel (0) target = $region65
    $region64: #{tpu_custom_call.1} parent=1 // pred_region
      %135 = dma.done [#allocation15], 128
    $region65: #{tpu_custom_call.1} parent=1 // pred_fallthru
      _
    %v137 = vld [vmem:[#allocation2] sm:$0xff]
    %v138 = vpack.c.bf16 %v137, %v137
    %v139 = vld [vmem:[#allocation13] sm:$0x1]
    %v140 = vld [vmem:[#allocation5] sm:$0xf]
    %v141 = vld [vmem:[#allocation5 + $0x4] sm:$0xf]
    %v142 = vld [vmem:[#allocation5 + $0x8] sm:$0xf]
    %v143 = vld [vmem:[#allocation5 + $0xc] sm:$0xf]
    %v144 = vld [vmem:[#allocation5 + $0x10] sm:$0xf]
    %v145 = vld [vmem:[#allocation5 + $0x14] sm:$0xf]
    %v146 = vld [vmem:[#allocation5 + $0x18] sm:$0xf]
    %v147 = vld [vmem:[#allocation5 + $0x1c] sm:$0xf]
    %v148 = vld [vmem:[#allocation5 + $0x20] sm:$0xf]
    %v149 = vld [vmem:[#allocation5 + $0x24] sm:$0xf]
    %v150 = vld [vmem:[#allocation5 + $0x28] sm:$0xf]
    %v151 = vld [vmem:[#allocation5 + $0x2c] sm:$0xf]
    %v152 = vld [vmem:[#allocation5 + $0x30] sm:$0xf]
    %v153 = vld [vmem:[#allocation5 + $0x34] sm:$0xf]
    %v154 = vld [vmem:[#allocation5 + $0x38] sm:$0xf]
    %v155 = vld [vmem:[#allocation5 + $0x3c] sm:$0xf]
    %v156 = vlaneseq
    %v157 = vshrl.u32 %v156, 7
    %v158 = vsub.s32 0, %v157
    %v159 = vrot.slane %v139, %v158
    %v176 = vunpack.c.l.b16 %v140
    %v177 = vunpack.c.l.b16 %v141
    %v178 = vunpack.c.l.b16 %v142
    %v179 = vunpack.c.l.b16 %v143
    %v180 = vunpack.c.l.b16 %v144
    %v181 = vunpack.c.l.b16 %v145
    %v182 = vunpack.c.l.b16 %v146
    %v183 = vunpack.c.l.b16 %v147
    %v184 = vunpack.c.l.b16 %v148
    %v185 = vunpack.c.l.b16 %v149
    %v186 = vunpack.c.l.b16 %v150
    %v187 = vunpack.c.l.b16 %v151
    %v188 = vunpack.c.l.b16 %v152
    %v189 = vunpack.c.l.b16 %v153
    %v190 = vunpack.c.l.b16 %v154
    %v191 = vunpack.c.l.b16 %v155
    %v192 = vpack.c.b16 %v177, %v176
    %v193 = vpack.c.b16 %v179, %v178
    %v194 = vpack.c.b16 %v181, %v180
    %v195 = vpack.c.b16 %v183, %v182
    %v196 = vpack.c.b16 %v185, %v184
    %v197 = vpack.c.b16 %v187, %v186
    %v198 = vpack.c.b16 %v189, %v188
    %v199 = vpack.c.b16 %v191, %v190
    %208 = vmatprep.subr.bf16.mxu0 0
    %209 = vmatpush1.bf16.msra.mxu0 %v192
    %210 = vmatprep.subr.bf16.mxu0 0
    %211 = vmatpush1.bf16.msra.mxu0 %v193
    %212 = vmatprep.subr.bf16.mxu0 0
    %213 = vmatpush1.bf16.msra.mxu0 %v194
    %214 = vmatprep.subr.bf16.mxu0 0
    %215 = vmatpush1.bf16.msra.mxu0 %v195
    %216 = vmatprep.subr.bf16.mxu0 0
    %217 = vmatpush1.bf16.msra.mxu0 %v196
    %218 = vmatprep.subr.bf16.mxu0 0
    %219 = vmatpush1.bf16.msra.mxu0 %v197
    %220 = vmatprep.subr.bf16.mxu0 0
    %221 = vmatpush1.bf16.msra.mxu0 %v198
    %222 = vmatprep.subr.bf16.mxu0 0
    %223 = vmatpush1.bf16.msra.mxu0 %v199
    %224 = vmatprep.subr.bf16.mxu0 0
    %225 = vmatpush1.bf16.msra.mxu0 0
    %226 = vmatprep.subr.bf16.mxu0 0
    %227 = vmatpush1.bf16.msra.mxu0 0
    %228 = vmatprep.subr.bf16.mxu0 0
    %229 = vmatpush1.bf16.msra.mxu0 0
    %230 = vmatprep.subr.bf16.mxu0 0
    %231 = vmatpush1.bf16.msra.mxu0 0
    %232 = vmatprep.subr.bf16.mxu0 0
    %233 = vmatpush1.bf16.msra.mxu0 0
    %234 = vmatprep.subr.bf16.mxu0 0
    %235 = vmatpush1.bf16.msra.mxu0 0
    %236 = vmatprep.subr.bf16.mxu0 0
    %237 = vmatpush1.bf16.msra.mxu0 0
    %238 = vmatprep.subr.bf16.mxu0 0
    %239 = vmatpush1.bf16.msra.mxu0 0
    %240 = vmatprep.mubr.bf16.mxu0 0
    %241 = vmatmul.mubr.bf16.gmra.mrb[0].mxu0 %v138
    %v242 = vpop.f32.mrb[0].mxu0
    %v243 = vadd.f32 %v159, %v242
    %v244 = vpop.f32.mrb[0].mxu0
    %v245 = vpop.f32.mrb[0].mxu0
    %v246 = vpop.f32.mrb[0].mxu0
    %247 = vdwg.mxu0
    %v248 = vmax.f32 %v243, 0.0
    %v249 = vpack.c.bf16 %v248, %v248
    %v250 = vld [vmem:[#allocation13 + $0x1] sm:$0x1]
    %v251 = vld [vmem:[#allocation7] sm:$0xf]
    %v252 = vld [vmem:[#allocation7 + $0x4] sm:$0xf]
    %v253 = vld [vmem:[#allocation7 + $0x8] sm:$0xf]
    %v254 = vld [vmem:[#allocation7 + $0xc] sm:$0xf]
    %v255 = vld [vmem:[#allocation7 + $0x10] sm:$0xf]
    %v256 = vld [vmem:[#allocation7 + $0x14] sm:$0xf]
    %v257 = vld [vmem:[#allocation7 + $0x18] sm:$0xf]
    %v258 = vld [vmem:[#allocation7 + $0x1c] sm:$0xf]
    %v259 = vld [vmem:[#allocation7 + $0x20] sm:$0xf]
    %v260 = vld [vmem:[#allocation7 + $0x24] sm:$0xf]
    %v261 = vld [vmem:[#allocation7 + $0x28] sm:$0xf]
    %v262 = vld [vmem:[#allocation7 + $0x2c] sm:$0xf]
    %v263 = vld [vmem:[#allocation7 + $0x30] sm:$0xf]
    %v264 = vld [vmem:[#allocation7 + $0x34] sm:$0xf]
    %v265 = vld [vmem:[#allocation7 + $0x38] sm:$0xf]
    %v266 = vld [vmem:[#allocation7 + $0x3c] sm:$0xf]
    %v267 = vlaneseq
    %v268 = vshrl.u32 %v267, 7
    %v269 = vsub.s32 0, %v268
    %v270 = vrot.slane %v250, %v269
    %v287 = vunpack.c.l.b16 %v251
    %v288 = vunpack.c.l.b16 %v252
    %v289 = vunpack.c.l.b16 %v253
    %v290 = vunpack.c.l.b16 %v254
    %v291 = vunpack.c.l.b16 %v255
    %v292 = vunpack.c.l.b16 %v256
    %v293 = vunpack.c.l.b16 %v257
    %v294 = vunpack.c.l.b16 %v258
    %v295 = vunpack.c.l.b16 %v259
    %v296 = vunpack.c.l.b16 %v260
    %v297 = vunpack.c.l.b16 %v261
    %v298 = vunpack.c.l.b16 %v262
    %v299 = vunpack.c.l.b16 %v263
    %v300 = vunpack.c.l.b16 %v264
    %v301 = vunpack.c.l.b16 %v265
    %v302 = vunpack.c.l.b16 %v266
    %v303 = vpack.c.b16 %v288, %v287
    %v304 = vpack.c.b16 %v290, %v289
    %v305 = vpack.c.b16 %v292, %v291
    %v306 = vpack.c.b16 %v294, %v293
    %v307 = vpack.c.b16 %v296, %v295
    %v308 = vpack.c.b16 %v298, %v297
    %v309 = vpack.c.b16 %v300, %v299
    %v310 = vpack.c.b16 %v302, %v301
    %319 = vmatprep.subr.bf16.mxu0 0
    %320 = vmatpush1.bf16.msra.mxu0 %v303
    %321 = vmatprep.subr.bf16.mxu0 0
    %322 = vmatpush1.bf16.msra.mxu0 %v304
    %323 = vmatprep.subr.bf16.mxu0 0
    %324 = vmatpush1.bf16.msra.mxu0 %v305
    %325 = vmatprep.subr.bf16.mxu0 0
    %326 = vmatpush1.bf16.msra.mxu0 %v306
    %327 = vmatprep.subr.bf16.mxu0 0
    %328 = vmatpush1.bf16.msra.mxu0 %v307
    %329 = vmatprep.subr.bf16.mxu0 0
    %330 = vmatpush1.bf16.msra.mxu0 %v308
    %331 = vmatprep.subr.bf16.mxu0 0
    %332 = vmatpush1.bf16.msra.mxu0 %v309
    %333 = vmatprep.subr.bf16.mxu0 0
    %334 = vmatpush1.bf16.msra.mxu0 %v310
    %335 = vmatprep.subr.bf16.mxu0 0
    %336 = vmatpush1.bf16.msra.mxu0 0
    %337 = vmatprep.subr.bf16.mxu0 0
    %338 = vmatpush1.bf16.msra.mxu0 0
    %339 = vmatprep.subr.bf16.mxu0 0
    %340 = vmatpush1.bf16.msra.mxu0 0
    %341 = vmatprep.subr.bf16.mxu0 0
    %342 = vmatpush1.bf16.msra.mxu0 0
    %343 = vmatprep.subr.bf16.mxu0 0
    %344 = vmatpush1.bf16.msra.mxu0 0
    %345 = vmatprep.subr.bf16.mxu0 0
    %346 = vmatpush1.bf16.msra.mxu0 0
    %347 = vmatprep.subr.bf16.mxu0 0
    %348 = vmatpush1.bf16.msra.mxu0 0
    %349 = vmatprep.subr.bf16.mxu0 0
    %350 = vmatpush1.bf16.msra.mxu0 0
    %351 = vmatprep.mubr.bf16.mxu0 0
    %352 = vmatmul.mubr.bf16.gmra.mrb[0].mxu0 %v249
    %v353 = vpop.f32.mrb[0].mxu0
    %v354 = vadd.f32 %v270, %v353
    %v355 = vpop.f32.mrb[0].mxu0
    %v356 = vpop.f32.mrb[0].mxu0
    %v357 = vpop.f32.mrb[0].mxu0
    %358 = vdwg.mxu0
    %v359 = vmax.f32 %v354, 0.0
    %v360 = vpack.c.bf16 %v359, %v359
    %v361 = vld [vmem:[#allocation14] sm:$0x1]
    %v362 = vld [vmem:[#allocation8] sm:$0xf]
    %v363 = vld [vmem:[#allocation8 + $0x4] sm:$0xf]
    %v364 = vld [vmem:[#allocation8 + $0x8] sm:$0xf]
    %v365 = vld [vmem:[#allocation8 + $0xc] sm:$0xf]
    %v366 = vld [vmem:[#allocation8 + $0x10] sm:$0xf]
    %v367 = vld [vmem:[#allocation8 + $0x14] sm:$0xf]
    %v368 = vld [vmem:[#allocation8 + $0x18] sm:$0xf]
    %v369 = vld [vmem:[#allocation8 + $0x1c] sm:$0xf]
    %v370 = vld [vmem:[#allocation8 + $0x20] sm:$0xf]
    %v371 = vld [vmem:[#allocation8 + $0x24] sm:$0xf]
    %v372 = vld [vmem:[#allocation8 + $0x28] sm:$0xf]
    %v373 = vld [vmem:[#allocation8 + $0x2c] sm:$0xf]
    %v374 = vld [vmem:[#allocation8 + $0x30] sm:$0xf]
    %v375 = vld [vmem:[#allocation8 + $0x34] sm:$0xf]
    %v376 = vld [vmem:[#allocation8 + $0x38] sm:$0xf]
    %v377 = vld [vmem:[#allocation8 + $0x3c] sm:$0xf]
    %v378 = vlaneseq
    %v379 = vshrl.u32 %v378, 7
    %v380 = vsub.s32 0, %v379
    %v381 = vrot.slane %v361, %v380
    %v398 = vunpack.c.l.b16 %v362
    %v399 = vunpack.c.l.b16 %v363
    %v400 = vunpack.c.l.b16 %v364
    %v401 = vunpack.c.l.b16 %v365
    %v402 = vunpack.c.l.b16 %v366
    %v403 = vunpack.c.l.b16 %v367
    %v404 = vunpack.c.l.b16 %v368
    %v405 = vunpack.c.l.b16 %v369
    %v406 = vunpack.c.l.b16 %v370
    %v407 = vunpack.c.l.b16 %v371
    %v408 = vunpack.c.l.b16 %v372
    %v409 = vunpack.c.l.b16 %v373
    %v410 = vunpack.c.l.b16 %v374
    %v411 = vunpack.c.l.b16 %v375
    %v412 = vunpack.c.l.b16 %v376
    %v413 = vunpack.c.l.b16 %v377
    %v414 = vpack.c.b16 %v399, %v398
    %v415 = vpack.c.b16 %v401, %v400
    %v416 = vpack.c.b16 %v403, %v402
    %v417 = vpack.c.b16 %v405, %v404
    %v418 = vpack.c.b16 %v407, %v406
    %v419 = vpack.c.b16 %v409, %v408
    %v420 = vpack.c.b16 %v411, %v410
    %v421 = vpack.c.b16 %v413, %v412
    %430 = vmatprep.subr.bf16.mxu0 0
    %431 = vmatpush1.bf16.msra.mxu0 %v414
    %432 = vmatprep.subr.bf16.mxu0 0
    %433 = vmatpush1.bf16.msra.mxu0 %v415
    %434 = vmatprep.subr.bf16.mxu0 0
    %435 = vmatpush1.bf16.msra.mxu0 %v416
    %436 = vmatprep.subr.bf16.mxu0 0
    %437 = vmatpush1.bf16.msra.mxu0 %v417
    %438 = vmatprep.subr.bf16.mxu0 0
    %439 = vmatpush1.bf16.msra.mxu0 %v418
    %440 = vmatprep.subr.bf16.mxu0 0
    %441 = vmatpush1.bf16.msra.mxu0 %v419
    %442 = vmatprep.subr.bf16.mxu0 0
    %443 = vmatpush1.bf16.msra.mxu0 %v420
    %444 = vmatprep.subr.bf16.mxu0 0
    %445 = vmatpush1.bf16.msra.mxu0 %v421
    %446 = vmatprep.subr.bf16.mxu0 0
    %447 = vmatpush1.bf16.msra.mxu0 0
    %448 = vmatprep.subr.bf16.mxu0 0
    %449 = vmatpush1.bf16.msra.mxu0 0
    %450 = vmatprep.subr.bf16.mxu0 0
    %451 = vmatpush1.bf16.msra.mxu0 0
    %452 = vmatprep.subr.bf16.mxu0 0
    %453 = vmatpush1.bf16.msra.mxu0 0
    %454 = vmatprep.subr.bf16.mxu0 0
    %455 = vmatpush1.bf16.msra.mxu0 0
    %456 = vmatprep.subr.bf16.mxu0 0
    %457 = vmatpush1.bf16.msra.mxu0 0
    %458 = vmatprep.subr.bf16.mxu0 0
    %459 = vmatpush1.bf16.msra.mxu0 0
    %460 = vmatprep.subr.bf16.mxu0 0
    %461 = vmatpush1.bf16.msra.mxu0 0
    %462 = vmatprep.mubr.bf16.mxu0 0
    %463 = vmatmul.mubr.bf16.gmra.mrb[0].mxu0 %v360
    %v464 = vpop.f32.mrb[0].mxu0
    %v465 = vadd.f32 %v381, %v464
    %v466 = vpop.f32.mrb[0].mxu0
    %v467 = vpop.f32.mrb[0].mxu0
    %v468 = vpop.f32.mrb[0].mxu0
    %469 = vdwg.mxu0
    %v470 = vpack.c.bf16 %v465, %v465
    %v471 = vld [vmem:[#allocation13 + $0x2] sm:$0x1]
    %v472 = vld [vmem:[#allocation10] sm:$0xf]
    %v473 = vld [vmem:[#allocation10 + $0x4] sm:$0xf]
    %v474 = vld [vmem:[#allocation10 + $0x8] sm:$0xf]
    %v475 = vld [vmem:[#allocation10 + $0xc] sm:$0xf]
    %v476 = vld [vmem:[#allocation10 + $0x10] sm:$0xf]
    %v477 = vld [vmem:[#allocation10 + $0x14] sm:$0xf]
    %v478 = vld [vmem:[#allocation10 + $0x18] sm:$0xf]
    %v479 = vld [vmem:[#allocation10 + $0x1c] sm:$0xf]
    %v480 = vld [vmem:[#allocation10 + $0x20] sm:$0xf]
    %v481 = vld [vmem:[#allocation10 + $0x24] sm:$0xf]
    %v482 = vld [vmem:[#allocation10 + $0x28] sm:$0xf]
    %v483 = vld [vmem:[#allocation10 + $0x2c] sm:$0xf]
    %v484 = vld [vmem:[#allocation10 + $0x30] sm:$0xf]
    %v485 = vld [vmem:[#allocation10 + $0x34] sm:$0xf]
    %v486 = vld [vmem:[#allocation10 + $0x38] sm:$0xf]
    %v487 = vld [vmem:[#allocation10 + $0x3c] sm:$0xf]
    %v488 = vlaneseq
    %v489 = vshrl.u32 %v488, 7
    %v490 = vsub.s32 0, %v489
    %v491 = vrot.slane %v471, %v490
    %v508 = vunpack.c.l.b16 %v472
    %v509 = vunpack.c.l.b16 %v473
    %v510 = vunpack.c.l.b16 %v474
    %v511 = vunpack.c.l.b16 %v475
    %v512 = vunpack.c.l.b16 %v476
    %v513 = vunpack.c.l.b16 %v477
    %v514 = vunpack.c.l.b16 %v478
    %v515 = vunpack.c.l.b16 %v479
    %v516 = vunpack.c.l.b16 %v480
    %v517 = vunpack.c.l.b16 %v481
    %v518 = vunpack.c.l.b16 %v482
    %v519 = vunpack.c.l.b16 %v483
    %v520 = vunpack.c.l.b16 %v484
    %v521 = vunpack.c.l.b16 %v485
    %v522 = vunpack.c.l.b16 %v486
    %v523 = vunpack.c.l.b16 %v487
    %v524 = vpack.c.b16 %v509, %v508
    %v525 = vpack.c.b16 %v511, %v510
    %v526 = vpack.c.b16 %v513, %v512
    %v527 = vpack.c.b16 %v515, %v514
    %v528 = vpack.c.b16 %v517, %v516
    %v529 = vpack.c.b16 %v519, %v518
    %v530 = vpack.c.b16 %v521, %v520
    %v531 = vpack.c.b16 %v523, %v522
    %540 = vmatprep.subr.bf16.mxu0 0
    %541 = vmatpush1.bf16.msra.mxu0 %v524
    %542 = vmatprep.subr.bf16.mxu0 0
    %543 = vmatpush1.bf16.msra.mxu0 %v525
    %544 = vmatprep.subr.bf16.mxu0 0
    %545 = vmatpush1.bf16.msra.mxu0 %v526
    %546 = vmatprep.subr.bf16.mxu0 0
    %547 = vmatpush1.bf16.msra.mxu0 %v527
    %548 = vmatprep.subr.bf16.mxu0 0
    %549 = vmatpush1.bf16.msra.mxu0 %v528
    %550 = vmatprep.subr.bf16.mxu0 0
    %551 = vmatpush1.bf16.msra.mxu0 %v529
    %552 = vmatprep.subr.bf16.mxu0 0
    %553 = vmatpush1.bf16.msra.mxu0 %v530
    %554 = vmatprep.subr.bf16.mxu0 0
    %555 = vmatpush1.bf16.msra.mxu0 %v531
    %556 = vmatprep.subr.bf16.mxu0 0
    %557 = vmatpush1.bf16.msra.mxu0 0
    %558 = vmatprep.subr.bf16.mxu0 0
    %559 = vmatpush1.bf16.msra.mxu0 0
    %560 = vmatprep.subr.bf16.mxu0 0
    %561 = vmatpush1.bf16.msra.mxu0 0
    %562 = vmatprep.subr.bf16.mxu0 0
    %563 = vmatpush1.bf16.msra.mxu0 0
    %564 = vmatprep.subr.bf16.mxu0 0
    %565 = vmatpush1.bf16.msra.mxu0 0
    %566 = vmatprep.subr.bf16.mxu0 0
    %567 = vmatpush1.bf16.msra.mxu0 0
    %568 = vmatprep.subr.bf16.mxu0 0
    %569 = vmatpush1.bf16.msra.mxu0 0
    %570 = vmatprep.subr.bf16.mxu0 0
    %571 = vmatpush1.bf16.msra.mxu0 0
    %572 = vmatprep.mubr.bf16.mxu0 0
    %573 = vmatmul.mubr.bf16.gmra.mrb[0].mxu0 %v470
    %v574 = vpop.f32.mrb[0].mxu0
    %v575 = vadd.f32 %v491, %v574
    %v576 = vpop.f32.mrb[0].mxu0
    %v577 = vpop.f32.mrb[0].mxu0
    %v578 = vpop.f32.mrb[0].mxu0
    %579 = vdwg.mxu0
    %v580 = vmax.f32 %v575, 0.0
    %v581 = vpack.c.bf16 %v580, %v580
    %v582 = vld [vmem:[#allocation14 + $0x1] sm:$0x1]
    %v583 = vld [vmem:[#allocation11] sm:$0xf]
    %v584 = vld [vmem:[#allocation11 + $0x4] sm:$0xf]
    %v585 = vld [vmem:[#allocation11 + $0x8] sm:$0xf]
    %v586 = vld [vmem:[#allocation11 + $0xc] sm:$0xf]
    %v587 = vld [vmem:[#allocation11 + $0x10] sm:$0xf]
    %v588 = vld [vmem:[#allocation11 + $0x14] sm:$0xf]
    %v589 = vld [vmem:[#allocation11 + $0x18] sm:$0xf]
    %v590 = vld [vmem:[#allocation11 + $0x1c] sm:$0xf]
    %v591 = vld [vmem:[#allocation11 + $0x20] sm:$0xf]
    %v592 = vld [vmem:[#allocation11 + $0x24] sm:$0xf]
    %v593 = vld [vmem:[#allocation11 + $0x28] sm:$0xf]
    %v594 = vld [vmem:[#allocation11 + $0x2c] sm:$0xf]
    %v595 = vld [vmem:[#allocation11 + $0x30] sm:$0xf]
    %v596 = vld [vmem:[#allocation11 + $0x34] sm:$0xf]
    %v597 = vld [vmem:[#allocation11 + $0x38] sm:$0xf]
    %v598 = vld [vmem:[#allocation11 + $0x3c] sm:$0xf]
    %v599 = vlaneseq
    %v600 = vshrl.u32 %v599, 7
    %v601 = vsub.s32 0, %v600
    %v602 = vrot.slane %v582, %v601
    %v619 = vunpack.c.l.b16 %v583
    %v620 = vunpack.c.l.b16 %v584
    %v621 = vunpack.c.l.b16 %v585
    %v622 = vunpack.c.l.b16 %v586
    %v623 = vunpack.c.l.b16 %v587
    %v624 = vunpack.c.l.b16 %v588
    %v625 = vunpack.c.l.b16 %v589
    %v626 = vunpack.c.l.b16 %v590
    %v627 = vunpack.c.l.b16 %v591
    %v628 = vunpack.c.l.b16 %v592
    %v629 = vunpack.c.l.b16 %v593
    %v630 = vunpack.c.l.b16 %v594
    %v631 = vunpack.c.l.b16 %v595
    %v632 = vunpack.c.l.b16 %v596
    %v633 = vunpack.c.l.b16 %v597
    %v634 = vunpack.c.l.b16 %v598
    %v635 = vpack.c.b16 %v620, %v619
    %v636 = vpack.c.b16 %v622, %v621
    %v637 = vpack.c.b16 %v624, %v623
    %v638 = vpack.c.b16 %v626, %v625
    %v639 = vpack.c.b16 %v628, %v627
    %v640 = vpack.c.b16 %v630, %v629
    %v641 = vpack.c.b16 %v632, %v631
    %v642 = vpack.c.b16 %v634, %v633
    %651 = vmatprep.subr.bf16.mxu0 0
    %652 = vmatpush1.bf16.msra.mxu0 %v635
    %653 = vmatprep.subr.bf16.mxu0 0
    %654 = vmatpush1.bf16.msra.mxu0 %v636
    %655 = vmatprep.subr.bf16.mxu0 0
    %656 = vmatpush1.bf16.msra.mxu0 %v637
    %657 = vmatprep.subr.bf16.mxu0 0
    %658 = vmatpush1.bf16.msra.mxu0 %v638
    %659 = vmatprep.subr.bf16.mxu0 0
    %660 = vmatpush1.bf16.msra.mxu0 %v639
    %661 = vmatprep.subr.bf16.mxu0 0
    %662 = vmatpush1.bf16.msra.mxu0 %v640
    %663 = vmatprep.subr.bf16.mxu0 0
    %664 = vmatpush1.bf16.msra.mxu0 %v641
    %665 = vmatprep.subr.bf16.mxu0 0
    %666 = vmatpush1.bf16.msra.mxu0 %v642
    %667 = vmatprep.subr.bf16.mxu0 0
    %668 = vmatpush1.bf16.msra.mxu0 0
    %669 = vmatprep.subr.bf16.mxu0 0
    %670 = vmatpush1.bf16.msra.mxu0 0
    %671 = vmatprep.subr.bf16.mxu0 0
    %672 = vmatpush1.bf16.msra.mxu0 0
    %673 = vmatprep.subr.bf16.mxu0 0
    %674 = vmatpush1.bf16.msra.mxu0 0
    %675 = vmatprep.subr.bf16.mxu0 0
    %676 = vmatpush1.bf16.msra.mxu0 0
    %677 = vmatprep.subr.bf16.mxu0 0
    %678 = vmatpush1.bf16.msra.mxu0 0
    %679 = vmatprep.subr.bf16.mxu0 0
    %680 = vmatpush1.bf16.msra.mxu0 0
    %681 = vmatprep.subr.bf16.mxu0 0
    %682 = vmatpush1.bf16.msra.mxu0 0
    %683 = vmatprep.mubr.bf16.mxu0 0
    %684 = vmatmul.mubr.bf16.gmra.mrb[0].mxu0 %v581
    %v685 = vpop.f32.mrb[0].mxu0
    %v686 = vadd.f32 %v602, %v685
    %v687 = vpop.f32.mrb[0].mxu0
    %v688 = vpop.f32.mrb[0].mxu0
    %v689 = vpop.f32.mrb[0].mxu0
    %690 = vdwg.mxu0
    %v691 = vmul.f32 %v465, %v465
    %692 = vadd.xlane.f32.xlu0 %v691
    %v693 = vpop.xlane.xlu0 %692
    %v694 = vmax.f32 %v693, 1e-24
    %v695 = vrsqrt.pop %v694
    %v696 = vmul.f32 %v465, %v695
    %697 = vst [vmem:[#allocation16] sm:$0xff] %v696
    %v698 = vmul.f32 %v686, %v686
    %699 = vadd.xlane.f32.xlu0 %v698
    %v700 = vpop.xlane.xlu0 %699
    %v701 = vmax.f32 %v700, 1e-24
    %v702 = vrsqrt.pop %v701
    %v703 = vmul.f32 %v686, %v702
    %704 = vst [vmem:[#allocation17] sm:$0xff] %v703
    // Predicated region
    $region66: #{tpu_custom_call.1} parent=1 // pred_check
      _
    $region67: #{tpu_custom_call.1} parent=1 // pred_check_branch
      %706 = sbr.rel (0) target = $region69
    $region68: #{tpu_custom_call.1} parent=1 // pred_region
      %s708 = ssub.s32 128, 128
      %709 = vsyncadd [#allocation4], %s708
      %s711 = sshll.u32 [#allocation16], 4
      %s712 = int_to_ptr.vmem [resolvable:$true] %s711
      %714 = dma.vmem_to_hbm [thread:$0]  %s712, 128, %s8, [#allocation4]
    $region69: #{tpu_custom_call.1} parent=1 // pred_fallthru
      _
    // Predicated region
    $region70: #{tpu_custom_call.1} parent=1 // pred_check
      _
    $region71: #{tpu_custom_call.1} parent=1 // pred_check_branch
      %716 = sbr.rel (0) target = $region73
    $region72: #{tpu_custom_call.1} parent=1 // pred_region
      %s718 = ssub.s32 128, 128
      %719 = vsyncadd [#allocation18], %s718
      %s721 = sshll.u32 [#allocation17], 4
      %s722 = int_to_ptr.vmem [resolvable:$true] %s721
      %724 = dma.vmem_to_hbm [thread:$0]  %s722, 128, %s9, [#allocation18]
    $region73: #{tpu_custom_call.1} parent=1 // pred_fallthru
      _
    // Predicated region
    $region74: #{tpu_custom_call.1} parent=1 // pred_check
      _
    $region75: #{tpu_custom_call.1} parent=1 // pred_check_branch
      %726 = sbr.rel (0) target = $region77
    $region76: #{tpu_custom_call.1} parent=1 // pred_region
      %727 = dma.done [#allocation4], 128
    $region77: #{tpu_custom_call.1} parent=1 // pred_fallthru
      _
    // Predicated region
    $region78: #{tpu_custom_call.1} parent=1 // pred_check
      _
    $region79: #{tpu_custom_call.1} parent=1 // pred_check_branch
      %729 = sbr.rel (0) target = $region81
    $region80: #{tpu_custom_call.1} parent=1 // pred_region
      %730 = dma.done [#allocation18], 128
    $region81: #{tpu_custom_call.1} parent=1 // pred_fallthru
      _
    %731 = vsyncpa [#allocation3], 1
    %732 = vsyncpa [#allocation6], 1
    %733 = vsyncpa [#allocation9], 1
    %734 = vsyncpa [#allocation12], 1
    %735 = vsyncpa [#allocation15], 1
    %736 = vsyncpa [#allocation4], 1
    %737 = vsyncpa [#allocation18], 1

</llo_original>
